<compile_context>
chip_gen: v7x
topology: tpu7x:2x2x1
jax: 0.10.0
libtpu: 0.0.40
codegen_flags: <defaults>
</compile_context>

<pallas_src>
import functools
import math

import jax
import jax.numpy as jnp
from jax.experimental import pallas as pl
from jax.experimental.pallas import tpu as pltpu


# ---------------------------------------------------------------------------
# Chip / tiling configuration helpers
# ---------------------------------------------------------------------------

@functools.lru_cache(maxsize=None)
def _chip_config():
    """Returns (target input-block bytes per grid step, scoped VMEM limit)."""
    vmem_phys = 64 * 1024 * 1024                      # conservative default (v7x-class)
    try:
        info = pltpu.get_tpu_info()
        vmem_phys = int(getattr(info, "vmem_capacity_bytes", vmem_phys)) or vmem_phys
    except Exception:
        pass
    if vmem_phys >= 96 * 1024 * 1024:                 # v5e / v6e: 128 MiB physical VMEM
        return 8 * 1024 * 1024, 64 * 1024 * 1024
    return 4 * 1024 * 1024, 48 * 1024 * 1024          # v7x-class: 64 MiB physical VMEM


def _sublane_align(dtype):
    """Sublane tile extent per dtype: 8 for 4-byte, 16 for bf16, 32 for int8/fp8."""
    return max(8, 32 // max(1, jnp.dtype(dtype).itemsize))


def _pick_tile(dim, align, cap):
    """Largest legal block extent <= cap for an array extent `dim`.

    Legal = multiple of `align` (TPU tiling of the last two block dims) or
    equal to the full extent.  Ragged last blocks are handled by a cdiv()
    grid plus in-kernel masking on the reduce axis / masked writeback on
    kept axes.
    """
    if dim <= align:
        return dim                                    # block == full extent
    return max(align, min(cap, (dim // align) * align))


def _ensure_two_blocks(dim, tile, align, total_bytes):
    """If a 'parallel' axis would have a single block but the problem is big
    enough (>= 2 MiB) that an extra grid step is free, halve the tile so both
    v7x TensorCores get work."""
    if tile >= dim and dim >= 2 * align and total_bytes >= (2 << 20):
        half = -(-dim // 2)
        return max(align, -(-half // align) * align)
    return tile


# ---------------------------------------------------------------------------
# Kernels
# ---------------------------------------------------------------------------

def _mean_trailing_kernel(x_ref, o_ref, acc_ref, *, inv_k, true_k, tk, acc_w,
                          n_groups, need_mask):
    """Row-wise mean over the last axis of an [M, K] slab.

    Grid: (M tiles, K tiles); K last ('arbitrary').  acc_ref is a narrow
    (tm, acc_w) fp32 accumulator; each step folds the (tm, tk) block into it
    with lane-tile-aligned slices (pure VPU adds).  The single cross-lane XLU
    reduce happens once per M tile, in the final K step.
    """
    ki = pl.program_id(1)
    last = pl.num_programs(1) - 1

    @pl.when(ki == 0)
    def _():
        acc_ref[...] = jnp.zeros_like(acc_ref)

    def _partial(x):
        # Lane-tile-aligned value slices (multiples of 128 on the lane axis):
        # no relayout, just elementwise vreg adds.
        p = x[:, 0:acc_w]
        for g in range(1, n_groups):
            p = p + x[:, g * acc_w:(g + 1) * acc_w]
        return p

    if need_mask:
        @pl.when(ki != last)
        def _():
            acc_ref[...] += _partial(x_ref[...].astype(jnp.float32))

        @pl.when(ki == last)
        def _():
            x = x_ref[...].astype(jnp.float32)
            # Mask by *global* column index — only the ragged last K block pays it.
            col = jax.lax.broadcasted_iota(jnp.int32, x.shape, 1) + ki * tk
            acc_ref[...] += _partial(jnp.where(col < true_k, x, 0.0))
    else:
        acc_ref[...] += _partial(x_ref[...].astype(jnp.float32))

    @pl.when(ki == last)
    def _():
        s = jnp.sum(acc_ref[...], axis=1, keepdims=True)    # one XLU reduce / M tile
        o_ref[...] = (s * inv_k).astype(o_ref.dtype)


def _mean_middle_kernel(x_ref, o_ref, acc_ref, *, inv_k, true_k, tk, need_mask):
    """Mean over the middle axis of an [L, K, N] slab (no HBM transpose).

    Grid: (L tiles, N tiles, K tiles); K last ('arbitrary').  The trailing
    kept dim N stays on lanes, so the output block is lane-dense.
    """
    ki = pl.program_id(2)
    last = pl.num_programs(2) - 1

    @pl.when(ki == 0)
    def _():
        acc_ref[...] = jnp.zeros_like(acc_ref)

    if need_mask:
        @pl.when(ki != last)
        def _():
            acc_ref[...] += jnp.sum(x_ref[...].astype(jnp.float32), axis=1)

        @pl.when(ki == last)
        def _():
            x = x_ref[...].astype(jnp.float32)
            row = jax.lax.broadcasted_iota(jnp.int32, x.shape, 1) + ki * tk
            acc_ref[...] += jnp.sum(jnp.where(row < true_k, x, 0.0), axis=1)
    else:
        acc_ref[...] += jnp.sum(x_ref[...].astype(jnp.float32), axis=1)

    @pl.when(ki == last)
    def _():
        o_ref[...] = (acc_ref[...] * inv_k).astype(o_ref.dtype)


# ---------------------------------------------------------------------------
# pallas_call wrappers
# ---------------------------------------------------------------------------

def _row_mean(x2d, true_k):
    """Mean over the last axis of [M, K]; returns [M, 1]."""
    m, k = x2d.shape
    dt = x2d.dtype
    itemsize = jnp.dtype(dt).itemsize
    target_bytes, vmem_limit = _chip_config()
    target_elems = max(8 * 128, target_bytes // itemsize)

    m_align = _sublane_align(dt)
    tm = _pick_tile(m, m_align, 512)
    tm = _ensure_two_blocks(m, tm, m_align, m * k * itemsize)

    # Cap tk so (a) the input block hits the per-chip byte target and (b) the
    # unrolled lane-chunk fold stays <= 64 adds.
    tk_cap = max(128, min(8192, (target_elems // max(tm, 1)) // 128 * 128))
    tk = _pick_tile(k, 128, tk_cap)
    need_mask = (k % tk) != 0

    if tk % 128 == 0:
        acc_w, n_groups = 128, tk // 128
    else:                                             # tiny full-extent K (< 128)
        acc_w, n_groups = tk, 1

    grid = (pl.cdiv(m, tm), pl.cdiv(k, tk))
    kernel = functools.partial(
        _mean_trailing_kernel, inv_k=1.0 / float(true_k), true_k=true_k,
        tk=tk, acc_w=acc_w, n_groups=n_groups, need_mask=need_mask)
    return pl.pallas_call(
        kernel,
        out_shape=jax.ShapeDtypeStruct((m, 1), dt),
        grid_spec=pltpu.PrefetchScalarGridSpec(
            num_scalar_prefetch=0,
            grid=grid,
            in_specs=[pl.BlockSpec((tm, tk), lambda i, ki: (i, ki))],
            out_specs=pl.BlockSpec((tm, 1), lambda i, ki: (i, 0)),
            scratch_shapes=[pltpu.VMEM((tm, acc_w), jnp.float32)],
        ),
        compiler_params=pltpu.CompilerParams(
            dimension_semantics=("parallel", "arbitrary"),
            vmem_limit_bytes=vmem_limit,
        ),
    )(x2d)


def _mid_mean(x3d, true_k):
    """Mean over the middle axis of [L, K, N]; returns [L, N]."""
    L, k, n = x3d.shape
    dt = x3d.dtype
    itemsize = jnp.dtype(dt).itemsize
    target_bytes, vmem_limit = _chip_config()
    target_elems = max(8 * 128, target_bytes // itemsize)

    k_align = _sublane_align(dt)
    tn = _pick_tile(n, 128, 2048)
    tkk_cap = max(k_align,
                  min(512, (target_elems // max(1, 8 * tn)) // k_align * k_align))
    tkk = _pick_tile(k, k_align, tkk_cap)
    tl_cap = max(1, min(1024, target_elems // max(1, tkk * tn)))
    tl = _pick_tile(L, 1, tl_cap)
    if (-(-L // tl)) * (-(-n // tn)) < 2:             # keep both TCs busy on v7x
        tl = _ensure_two_blocks(L, tl, 1, L * k * n * itemsize)
    need_mask = (k % tkk) != 0

    grid = (pl.cdiv(L, tl), pl.cdiv(n, tn), pl.cdiv(k, tkk))
    kernel = functools.partial(
        _mean_middle_kernel, inv_k=1.0 / float(true_k), true_k=true_k,
        tk=tkk, need_mask=need_mask)
    return pl.pallas_call(
        kernel,
        out_shape=jax.ShapeDtypeStruct((L, n), dt),
        grid_spec=pltpu.PrefetchScalarGridSpec(
            num_scalar_prefetch=0,
            grid=grid,
            in_specs=[pl.BlockSpec((tl, tkk, tn), lambda i, j, ki: (i, ki, j))],
            out_specs=pl.BlockSpec((tl, tn), lambda i, j, ki: (i, j)),
            scratch_shapes=[pltpu.VMEM((tl, tn), jnp.float32)],
        ),
        compiler_params=pltpu.CompilerParams(
            dimension_semantics=("parallel", "parallel", "arbitrary"),
            vmem_limit_bytes=vmem_limit,
        ),
    )(x3d)


# ---------------------------------------------------------------------------
# deephi_Mean forward
# ---------------------------------------------------------------------------

def _contiguous_groups(dims):
    groups, cur = [], [dims[0]]
    for d in dims[1:]:
        if d == cur[-1] + 1:
            cur.append(d)
        else:
            groups.append(tuple(cur))
            cur = [d]
    groups.append(tuple(cur))
    return groups


def _group_mean(y, group):
    """Reduce one contiguous group of axes of y (keepdim=False)."""
    ndim = y.ndim
    a, b = group[0], group[-1]
    k_total = int(math.prod(y.shape[d] for d in group))
    lead_shape = y.shape[:a]
    trail_shape = y.shape[b + 1:]

    if b == ndim - 1:
        # Trailing reduce: pure reshape, read the array from HBM exactly once.
        m = int(math.prod(lead_shape)) if lead_shape else 1
        return _row_mean(y.reshape(m, k_total), k_total).reshape(lead_shape)

    L = int(math.prod(lead_shape)) if lead_shape else 1
    n = int(math.prod(trail_shape))
    if n >= 128:
        # Middle-block reduce, no transpose, lane-dense output.
        return _mid_mean(y.reshape(L, k_total, n), k_total).reshape(lead_shape + trail_shape)

    # Small trailing kept size: lane utilization of the middle kernel would be
    # n/128, so a (small) transpose + lane-dense row-mean wins here.
    perm = tuple(range(a)) + tuple(range(b + 1, ndim)) + tuple(group)
    yt = jnp.transpose(y, perm)
    return _row_mean(yt.reshape(L * n, k_total), k_total).reshape(lead_shape + trail_shape)


def deephi_mean(x, dim, keepdim=False):
    """JAX/Pallas equivalent of deephi_Mean.forward(input, dim, keepdim)."""
    ndim = x.ndim
    dims = (dim,) if isinstance(dim, int) else tuple(dim)
    dims = tuple(sorted({d % ndim for d in dims}))

    if not jnp.issubdtype(x.dtype, jnp.floating):
        # torch.mean rejects integer inputs; promote like jnp.mean would.
        x = x.astype(jnp.float32)

    # Decompose into contiguous-axis groups and reduce the trailing-most group
    # first (indices of remaining groups stay valid); each stage reads its
    # input from HBM exactly once — no full transpose for non-contiguous dims.
    y = x
    for g in reversed(_contiguous_groups(dims)):
        y = _group_mean(y, g)

    if keepdim:
        y = y.reshape(tuple(1 if d in dims else x.shape[d] for d in range(ndim)))
    return y


# ---------------------------------------------------------------------------
# Self-test
# ---------------------------------------------------------------------------

if __name__ == "__main__":
    key = jax.random.PRNGKey(0)
    k1, k2, k3 = jax.random.split(key, 3)

    # NCHW input, as produced by the PyTorch conv pipeline feeding this op.
    x = jax.random.normal(k1, (2, 4, 16, 16), dtype=jnp.float32)

    # Case 1: global spatial mean (dim=(2,3), keepdim=True) -> trailing path.
    out1 = deephi_mean(x, dim=(2, 3), keepdim=True)
    # Case 2: channel mean (dim=1) -> middle path (lane-dense output, no transpose).
    out2 = deephi_mean(x, dim=1, keepdim=False)
    # Case 3: non-contiguous dims -> staged contiguous reductions.
    out3 = deephi_mean(x, dim=(0, 2), keepdim=False)
    # Case 4: ragged M and K (exercises the masked edge-block paths).
    xr = jax.random.normal(k2, (15, 150), dtype=jnp.float32)
    out4 = deephi_mean(xr, dim=1, keepdim=False)
    # Case 5: bf16 input, f32 accumulation.
    xb = jax.random.normal(k3, (2, 4, 16, 16), dtype=jnp.bfloat16)
    out5 = deephi_mean(xb, dim=(2, 3), keepdim=True)

    out1, out2, out3, out4, out5 = jax.block_until_ready((out1, out2, out3, out4, out5))

    ref1 = jnp.mean(x, axis=(2, 3), keepdims=True)
    ref2 = jnp.mean(x, axis=1)
    ref3 = jnp.mean(x, axis=(0, 2))
    ref4 = jnp.mean(xr, axis=1)
    ref5 = jnp.mean(xb.astype(jnp.float32), axis=(2, 3), keepdims=True)

    assert out1.shape == ref1.shape == (2, 4, 1, 1)
    assert out2.shape == ref2.shape == (2, 16, 16)
    assert out3.shape == ref3.shape == (4, 16)
    assert out4.shape == ref4.shape == (15,)
    assert out5.shape == (2, 4, 1, 1) and out5.dtype == jnp.bfloat16
    assert jnp.allclose(out1, ref1, atol=1e-5, rtol=1e-5)
    assert jnp.allclose(out2, ref2, atol=1e-5, rtol=1e-5)
    assert jnp.allclose(out3, ref3, atol=1e-5, rtol=1e-5)
    assert jnp.allclose(out4, ref4, atol=1e-5, rtol=1e-5)
    assert jnp.allclose(out5.astype(jnp.float32), ref5, atol=2e-2, rtol=2e-2)

    print("KERNEL_OK")
</pallas_src>

<mosaic_0001>
module attributes {stable_mosaic.version = 11 : i64} {
  func.func @_mean_trailing_kernel(%arg0: i32, %arg1: i32, %arg2: memref<8x256xf32, #tpu.memory_space<vmem>>, %arg3: memref<8x1xf32, #tpu.memory_space<vmem>>, %arg4: memref<8x128xf32, #tpu.memory_space<vmem>>) attributes {dimension_semantics = [#tpu.dimension_semantics<parallel>, #tpu.dimension_semantics<arbitrary>], iteration_bounds = array<i64: 1, 1>, scalar_prefetch = 0 : i64, scratch_operands = 1 : i64, tpu.core_type = #tpu.core_type<tc>, window_params = [{transform_indices = @transform_0, window_bounds = array<i64: 8, 256>}, {transform_indices = @transform_1, window_bounds = array<i64: 8, 1>}]} {
    %c0_i32 = arith.constant 0 : i32
    %0 = arith.cmpi eq, %arg1, %c0_i32 : i32
    %1 = arith.extui %0 : i1 to i32
    %c0_i32_0 = arith.constant 0 : i32
    %2 = arith.cmpi ne, %1, %c0_i32_0 : i32
    scf.if %2 {
      %cst = arith.constant 0.000000e+00 : f32
      %13 = vector.broadcast %cst : f32 to vector<8x128xf32>
      %c0_8 = arith.constant 0 : index
      %c0_9 = arith.constant 0 : index
      %14 = vector.load %arg4[%c0_8, %c0_9] : memref<8x128xf32, #tpu.memory_space<vmem>>, vector<8x128xf32>
      tpu.vector_store %arg4[%c0_8, %c0_9], %13 {strides = array<i32>} : memref<8x128xf32, #tpu.memory_space<vmem>>, vector<8x128xf32>,
    } else {
    }
    %c0 = arith.constant 0 : index
    %c0_1 = arith.constant 0 : index
    %3 = vector.load %arg4[%c0, %c0_1] : memref<8x128xf32, #tpu.memory_space<vmem>>, vector<8x128xf32>
    %c0_2 = arith.constant 0 : index
    %c0_3 = arith.constant 0 : index
    %4 = vector.load %arg2[%c0_2, %c0_3] : memref<8x256xf32, #tpu.memory_space<vmem>>, vector<8x256xf32>
    %5 = vector.extract_strided_slice %4 {offsets = [0, 0], sizes = [8, 128], strides = [1, 1]} : vector<8x256xf32> to vector<8x128xf32>
    %6 = vector.extract_strided_slice %4 {offsets = [0, 128], sizes = [8, 128], strides = [1, 1]} : vector<8x256xf32> to vector<8x128xf32>
    %7 = arith.addf %5, %6 : vector<8x128xf32>
    %8 = arith.addf %3, %7 : vector<8x128xf32>
    %c0_4 = arith.constant 0 : index
    %c0_5 = arith.constant 0 : index
    %9 = vector.load %arg4[%c0_4, %c0_5] : memref<8x128xf32, #tpu.memory_space<vmem>>, vector<8x128xf32>
    tpu.vector_store %arg4[%c0_4, %c0_5], %8 {strides = array<i32>} : memref<8x128xf32, #tpu.memory_space<vmem>>, vector<8x128xf32>,
    %c0_i32_6 = arith.constant 0 : i32
    %10 = arith.cmpi eq, %arg1, %c0_i32_6 : i32
    %11 = arith.extui %10 : i1 to i32
    %c0_i32_7 = arith.constant 0 : i32
    %12 = arith.cmpi ne, %11, %c0_i32_7 : i32
    scf.if %12 {
      %c0_8 = arith.constant 0 : index
      %c0_9 = arith.constant 0 : index
      %13 = vector.load %arg4[%c0_8, %c0_9] : memref<8x128xf32, #tpu.memory_space<vmem>>, vector<8x128xf32>
      %cst = arith.constant dense<0.000000e+00> : vector<8xf32>
      %14 = vector.multi_reduction <add>, %13, %cst [1] : vector<8x128xf32> to vector<8xf32>
      %15 = vector.shape_cast %14 : vector<8xf32> to vector<8x1xf32>
      %cst_10 = arith.constant 3.906250e-03 : f32
      %16 = vector.broadcast %cst_10 : f32 to vector<8x1xf32>
      %17 = arith.mulf %15, %16 : vector<8x1xf32>
      %c0_11 = arith.constant 0 : index
      %c0_12 = arith.constant 0 : index
      %18 = vector.load %arg3[%c0_11, %c0_12] : memref<8x1xf32, #tpu.memory_space<vmem>>, vector<8x1xf32>
      tpu.vector_store %arg3[%c0_11, %c0_12], %17 {strides = array<i32>} : memref<8x1xf32, #tpu.memory_space<vmem>>, vector<8x1xf32>,
    } else {
    }
    return
  }
  func.func @transform_0(%arg0: i32, %arg1: i32) -> (i32, i32) {
    %c0_i32 = arith.constant 0 : i32
    return %arg0, %arg1 : i32, i32
  }
  func.func @transform_1(%arg0: i32, %arg1: i32) -> (i32, i32) {
    %c0_i32 = arith.constant 0 : i32
    %c0_i32_0 = arith.constant 0 : i32
    return %arg0, %c0_i32 : i32, i32
  }
}

</mosaic_0001>

<llo_original>
// kernel: tpu_custom_call.1
$region0: #{tpu_custom_call.1}
  #allocation0 [shape = 'u32[]', space=smem, size = 0x4, offset = 0x4, fixed_abs, tag = 'smem constant byte address 0x4 - core index']
  #allocation1 [shape = 'u32[144,128]{1,0:T(1,128)}', space=vmem, size = 0x12000, scoped, tag = 'internal scratch']
  #allocation2 [shape = 'f32[8,128]{1,0:T(8,128)}', space=vmem, size = 0x1000, scoped, tag = 'scratch operand']
  %s0 = inlined_call_operand.hbm [shape: f32[8,256], index: 0, kind: input, shape index: {}]
  %s1 = inlined_call_operand.vmem [shape: f32[8,1], index: 1, kind: output, shape index: {}]
  %s2 = sld [smem:[#allocation0]]
  $region26: #{tpu_custom_call.1} parent=0
    _
  %s4 = ssub.s32 1, %s2
  %s5 = scalar_select 0, %s4, %s2
  $region1: #{tpu_custom_call.1} parent=0
    #allocation3 [shape = 'u8[8192]{0}', space=vmem, size = 0x2000, scoped, tag = 'input window, operand 0, single buffered']
    #allocation4 [shape = 's32[1]{0}', space=sflag, size = 0x4, scoped, tag = 'scoped memory for tpu_custom_call.1']
    %6 = vsyncpa [#allocation4], 0
    // Predicated region
    $region2: #{tpu_custom_call.1} parent=1 // pred_check
      _
    $region3: #{tpu_custom_call.1} parent=1 // pred_check_branch
      %8 = sbr.rel (0) target = $region5
    $region4: #{tpu_custom_call.1} parent=1 // pred_region
      %s10 = ssub.s32 256, 256
      %11 = vsyncadd [#allocation4], %s10
      %s13 = sshll.u32 [#allocation3], 4
      %s14 = int_to_ptr.vmem [resolvable:$true] %s13
      %16 = dma.hbm_to_vmem [thread:$0]  %s0, 256, %s14, [#allocation4]
    $region5: #{tpu_custom_call.1} parent=1 // pred_fallthru
      _
    // Predicated region
    $region6: #{tpu_custom_call.1} parent=1 // pred_check
      _
    $region7: #{tpu_custom_call.1} parent=1 // pred_check_branch
      %18 = sbr.rel (0) target = $region9
    $region8: #{tpu_custom_call.1} parent=1 // pred_region
      %19 = dma.done [#allocation4], 256
    $region9: #{tpu_custom_call.1} parent=1 // pred_fallthru
      _
    %p20 = scmp.eq.s32.totalorder 0, 0
    // Predicated region
    $region10: #{tpu_custom_call.1} parent=1 // pred_check
      %p21 = pneg %p20
    $region11: #{tpu_custom_call.1} parent=1 // pred_check_branch
      %23 = sbr.rel (%p21) target = $region13
    $region12: #{tpu_custom_call.1} parent=1 // pred_region
      %24 = vst [vmem:[#allocation2] sm:$0xff] 0.0
    $region13: #{tpu_custom_call.1} parent=1 // pred_fallthru
      _
    %v25 = vld [vmem:[#allocation2] sm:$0xff]
    %v26 = vld [vmem:[#allocation3] sm:$0xff]
    %v27 = vld [vmem:[#allocation3 + $0x8] sm:$0xff]
    %v28 = vadd.f32 %v26, %v27
    %v29 = vadd.f32 %v25, %v28
    %30 = vst [vmem:[#allocation2] sm:$0xff] %v29
    // Predicated region
    $region14: #{tpu_custom_call.1} parent=1 // pred_check
      %p31 = pneg %p20
    $region15: #{tpu_custom_call.1} parent=1 // pred_check_branch
      %33 = sbr.rel (%p31) target = $region17
    $region16: #{tpu_custom_call.1} parent=1 // pred_region
      %v34 = vld [vmem:[#allocation2] sm:$0xff]
      %35 = vadd.xlane.f32.xlu0 %v34
      %v36 = vpop.xlane.xlu0 %35
      %v37 = vmul.f32 %v36, 0.00390625
      %vm38 = vcmask 7168
      %39 = vst.msk [vmem:[%s1] sm:$0xff] %vm38, %v37
    $region17: #{tpu_custom_call.1} parent=1 // pred_fallthru
      _
    // Predicated region
    $region18: #{tpu_custom_call.1} parent=1 // pred_check
      _
    $region19: #{tpu_custom_call.1} parent=1 // pred_check_branch
      %41 = sbr.rel (0) target = $region21
    $region20: #{tpu_custom_call.1} parent=1 // pred_region
      _
    $region21: #{tpu_custom_call.1} parent=1 // pred_fallthru
      _
    // Predicated region
    $region22: #{tpu_custom_call.1} parent=1 // pred_check
      _
    $region23: #{tpu_custom_call.1} parent=1 // pred_check_branch
      %43 = sbr.rel (0) target = $region25
    $region24: #{tpu_custom_call.1} parent=1 // pred_region
      _
    $region25: #{tpu_custom_call.1} parent=1 // pred_fallthru
      _
    %44 = vsyncpa [#allocation4], 1

</llo_original>
